<compile_context>
chip_gen: v7x
topology: tpu7x:2x2x1
jax: 0.10.0
libtpu: 0.0.40
codegen_flags: <defaults>
</compile_context>

<pallas_src>
import functools

import jax
import jax.numpy as jnp
from jax.experimental import pallas as pl
from jax.experimental.pallas import tpu as pltpu


def _round_up(x, m):
    return ((x + m - 1) // m) * m


def _pick_block_b(B, T, H, max_block_b, tile_budget_bytes):
    """Batch-block size: multiple of 8, as large as the VMEM tile budget allows,
    capped so the grid keeps >= 2 parallel steps when the batch is big (v7x)."""
    row_bytes = T * H * 4                                   # f32 (T, H) slab per row
    cap = max(8, (tile_budget_bytes // (2 * row_bytes)) // 8 * 8)  # double-buffered
    bb = max(8, min(max_block_b, cap, _round_up(B, 8)))
    if B > 8 and pl.cdiv(B, bb) < 2:
        bb = max(8, min(bb, _round_up(pl.cdiv(B, 2), 8)))
    return bb


def _head_kernel(lens_ref, lstm_ref, w_ref, bias_ref, out_ref, *, half_h):
    """One batch block.

    lens_ref : VMEM (block_b, 1) i32   sequence lengths
    lstm_ref : VMEM (block_b, T, H)    streamed lstm tile (auto-pipelined)
    w_ref    : VMEM (H, C_pad)         fused dense1@out_proj weight (resident)
    bias_ref : VMEM (1, C_pad)         fused bias (resident)
    out_ref  : VMEM (block_b, C_pad)   lane-dense output block
    """
    lstm = lstm_ref[...]                                    # (bb, T, H)
    bb, T, H = lstm.shape

    # Forward-direction hidden at the last valid timestep: one-hot over T, then
    # a sublane reduce (XLU).  t_last clamped to [0, T-1].
    t_last = jnp.maximum(lens_ref[...] - 1, 0)              # (bb, 1) i32
    t_idx = jax.lax.broadcasted_iota(jnp.int32, (bb, T), 1)
    onehot = (t_idx == t_last).astype(lstm.dtype)           # (bb, T)
    fw = jnp.sum(lstm * onehot[:, :, None], axis=1)         # (bb, H)

    # Backward-direction hidden at t = 0.
    bw = lstm[:, 0, :]                                      # (bb, H)

    # concat([fw[:, :H/2], bw[:, H/2:]], axis=1) as a lane-wise select (VPU).
    lane = jax.lax.broadcasted_iota(jnp.int32, (bb, H), 1)
    x = jnp.where(lane < half_h, fw, bw)                    # (bb, H)

    # Fused head: single MXU matmul, lane-dense f32 output.
    y = jnp.dot(x, w_ref[...], preferred_element_type=jnp.float32) + bias_ref[...]
    out_ref[...] = y.astype(out_ref.dtype)


def classification_head_first(lstm_out, mask, w1, b1, w2, b2, *,
                              max_block_b=128,
                              tile_budget_bytes=8 * 1024 * 1024):
    """lstm_out: (B, T, H) f32, mask: (B, T) int,
       w1: (H, inner) f32, b1: (1, inner) f32,   (PyTorch Linear weights, pre-transposed)
       w2: (inner, C) f32, b2: (1, C) f32   ->   (B, C) f32"""
    B, T, H = lstm_out.shape
    C = w2.shape[1]
    half_h = H // 2

    # Mask handled entirely in the wrapper; only lengths reach the kernel.
    lengths = jnp.sum(mask.astype(jnp.int32), axis=-1).astype(jnp.int32)

    # Fuse dense1 -> dropout(identity) -> out_proj into one affine map.
    W = jnp.dot(w1, w2)                                     # (H, C)
    bias = jnp.dot(b1, w2) + b2                             # (1, C)

    # Lane-dense output: pad classes up to a multiple of 128.
    C_pad = _round_up(max(C, 1), 128)
    W = jnp.pad(W, ((0, 0), (0, C_pad - C)))
    bias = jnp.pad(bias, ((0, 0), (0, C_pad - C)))

    block_b = _pick_block_b(B, T, H, max_block_b, tile_budget_bytes)
    nb = pl.cdiv(B, block_b)
    b_pad = nb * block_b

    if b_pad != B:
        lstm_out = jnp.pad(lstm_out, ((0, b_pad - B), (0, 0), (0, 0)))
        lengths = jnp.pad(lengths, (0, b_pad - B), constant_values=1)
    lengths2d = lengths.reshape(b_pad, 1)

    kernel = functools.partial(_head_kernel, half_h=half_h)

    out = pl.pallas_call(
        kernel,
        out_shape=jax.ShapeDtypeStruct((b_pad, C_pad), jnp.float32),
        grid=(nb,),
        in_specs=[
            pl.BlockSpec((block_b, 1), lambda g: (g, 0)),        # lengths
            pl.BlockSpec((block_b, T, H), lambda g: (g, 0, 0)),  # lstm tile (streamed)
            pl.BlockSpec((H, C_pad), lambda g: (0, 0)),          # fused W (resident)
            pl.BlockSpec((1, C_pad), lambda g: (0, 0)),          # fused bias (resident)
        ],
        out_specs=pl.BlockSpec((block_b, C_pad), lambda g: (g, 0)),
        compiler_params=pltpu.CompilerParams(
            dimension_semantics=("parallel",)),                  # 2 TCs on v7x
    )(lengths2d, lstm_out, W, bias)
    return out[:B, :C]


def _reference(lstm_out, mask, w1, b1, w2, b2):
    B, T, H = lstm_out.shape
    Hh = H // 2
    lengths = jnp.sum(mask, axis=-1)
    fw = lstm_out[jnp.arange(B), lengths - 1, :Hh]
    bw = lstm_out[:, 0, Hh:]
    x = jnp.concatenate([fw, bw], axis=1)
    return (x @ w1 + b1) @ w2 + b2


if __name__ == "__main__":
    # Shapes consistent with the module: input_dim=32 (bi-LSTM, 2*16),
    # inner_dim=32, num_classes=4, batch=2, seq=8.
    B, T, H, INNER, C = 2, 8, 32, 32, 4

    key = jax.random.PRNGKey(0)
    k_lstm, k_w1, k_b1, k_w2, k_b2 = jax.random.split(key, 5)

    lstm_out = jax.random.normal(k_lstm, (B, T, H), dtype=jnp.float32)

    # Variable sequence lengths -> contiguous-prefix mask.
    lengths = jnp.array([5, 8], dtype=jnp.int32)
    mask = (jnp.arange(T, dtype=jnp.int32)[None, :] < lengths[:, None]).astype(jnp.int32)

    # Deterministic params (PyTorch Linear weight is (out, in); stored transposed).
    w1 = jax.random.normal(k_w1, (H, INNER), dtype=jnp.float32) * 0.05
    b1 = jax.random.normal(k_b1, (1, INNER), dtype=jnp.float32) * 0.05
    w2 = jax.random.normal(k_w2, (INNER, C), dtype=jnp.float32) * 0.05
    b2 = jax.random.normal(k_b2, (1, C), dtype=jnp.float32) * 0.05

    out = classification_head_first(lstm_out, mask, w1, b1, w2, b2)
    out = jax.block_until_ready(out)

    ref = _reference(lstm_out, mask, w1, b1, w2, b2)
    assert out.shape == (B, C)
    assert jnp.allclose(out, ref, atol=1e-4, rtol=1e-4)

    print("KERNEL_OK")
</pallas_src>

<mosaic_0001>
module attributes {stable_mosaic.version = 11 : i64} {
  func.func @_head_kernel(%arg0: i32, %arg1: memref<8x1xi32, #tpu.memory_space<vmem>>, %arg2: memref<8x8x32xf32, #tpu.memory_space<vmem>>, %arg3: memref<32x128xf32, #tpu.memory_space<vmem>>, %arg4: memref<1x128xf32, #tpu.memory_space<vmem>>, %arg5: memref<8x128xf32, #tpu.memory_space<vmem>>) attributes {dimension_semantics = [#tpu.dimension_semantics<parallel>], iteration_bounds = array<i64: 1>, scalar_prefetch = 0 : i64, scratch_operands = 0 : i64, tpu.core_type = #tpu.core_type<tc>, window_params = [{transform_indices = @transform_0, window_bounds = array<i64: 8, 1>}, {transform_indices = @transform_1, window_bounds = array<i64: 8, 8, 32>}, {pipeline_mode = #tpu.pipeline_mode<synchronous>, transform_indices = @transform_2, window_bounds = array<i64: 32, 128>}, {pipeline_mode = #tpu.pipeline_mode<synchronous>, transform_indices = @transform_3, window_bounds = array<i64: 1, 128>}, {transform_indices = @transform_4, window_bounds = array<i64: 8, 128>}]} {
    %c0 = arith.constant 0 : index
    %c0_0 = arith.constant 0 : index
    %c0_1 = arith.constant 0 : index
    %0 = vector.load %arg2[%c0, %c0_0, %c0_1] : memref<8x8x32xf32, #tpu.memory_space<vmem>>, vector<8x8x32xf32>
    %c0_2 = arith.constant 0 : index
    %c0_3 = arith.constant 0 : index
    %1 = vector.load %arg1[%c0_2, %c0_3] : memref<8x1xi32, #tpu.memory_space<vmem>>, vector<8x1xi32>
    %c1_i32 = arith.constant 1 : i32
    %2 = vector.broadcast %c1_i32 : i32 to vector<8x1xi32>
    %3 = arith.subi %1, %2 : vector<8x1xi32>
    %c0_i32 = arith.constant 0 : i32
    %4 = vector.broadcast %c0_i32 : i32 to vector<8x1xi32>
    %5 = arith.maxsi %3, %4 : vector<8x1xi32>
    %6 = tpu.iota {dimensions = array<i32: 1>} : vector<8x8xi32>
    %7 = vector.broadcast %5 : vector<8x1xi32> to vector<8x8xi32>
    %8 = arith.cmpi eq, %6, %7 : vector<8x8xi32>
    %9 = arith.extui %8 : vector<8x8xi1> to vector<8x8xi32>
    %10 = arith.sitofp %9 : vector<8x8xi32> to vector<8x8xf32>
    %11 = vector.shape_cast %10 : vector<8x8xf32> to vector<8x8x1xf32>
    %12 = vector.broadcast %11 : vector<8x8x1xf32> to vector<8x8x32xf32>
    %13 = arith.mulf %0, %12 : vector<8x8x32xf32>
    %cst = arith.constant dense<0.000000e+00> : vector<8x32xf32>
    %14 = vector.multi_reduction <add>, %13, %cst [1] : vector<8x8x32xf32> to vector<8x32xf32>
    %15 = vector.extract_strided_slice %0 {offsets = [0, 0, 0], sizes = [8, 1, 32], strides = [1, 1, 1]} : vector<8x8x32xf32> to vector<8x1x32xf32>
    %16 = vector.shape_cast %15 : vector<8x1x32xf32> to vector<8x32xf32>
    %17 = tpu.iota {dimensions = array<i32: 1>} : vector<8x32xi32>
    %c16_i32 = arith.constant 16 : i32
    %18 = vector.broadcast %c16_i32 : i32 to vector<8x32xi32>
    %19 = arith.cmpi slt, %17, %18 : vector<8x32xi32>
    %20 = arith.select %19, %14, %16 : vector<8x32xi1>, vector<8x32xf32>
    %c0_4 = arith.constant 0 : index
    %c0_5 = arith.constant 0 : index
    %21 = vector.load %arg3[%c0_4, %c0_5] : memref<32x128xf32, #tpu.memory_space<vmem>>, vector<32x128xf32>
    %cst_6 = arith.constant dense<0.000000e+00> : vector<8x128xf32>
    %22 = tpu.matmul %20, %21, %cst_6 {dimension_numbers = #tpu.dot_dimension_numbers<[1], [0], [0], [1], [0, 0, 1, 1], [], []>} : vector<8x32xf32>, vector<32x128xf32>, vector<8x128xf32> -> vector<8x128xf32>
    %c0_7 = arith.constant 0 : index
    %c0_8 = arith.constant 0 : index
    %23 = vector.load %arg4[%c0_7, %c0_8] : memref<1x128xf32, #tpu.memory_space<vmem>>, vector<1x128xf32>
    %24 = vector.broadcast %23 : vector<1x128xf32> to vector<8x128xf32>
    %25 = arith.addf %22, %24 : vector<8x128xf32>
    %c0_9 = arith.constant 0 : index
    %c0_10 = arith.constant 0 : index
    %26 = vector.load %arg5[%c0_9, %c0_10] : memref<8x128xf32, #tpu.memory_space<vmem>>, vector<8x128xf32>
    tpu.vector_store %arg5[%c0_9, %c0_10], %25 {strides = array<i32>} : memref<8x128xf32, #tpu.memory_space<vmem>>, vector<8x128xf32>,
    return
  }
  func.func @transform_0(%arg0: i32) -> (i32, i32) {
    %c0_i32 = arith.constant 0 : i32
    %c0_i32_0 = arith.constant 0 : i32
    return %arg0, %c0_i32 : i32, i32
  }
  func.func @transform_1(%arg0: i32) -> (i32, i32, i32) {
    %c0_i32 = arith.constant 0 : i32
    %c0_i32_0 = arith.constant 0 : i32
    %c0_i32_1 = arith.constant 0 : i32
    return %arg0, %c0_i32, %c0_i32_0 : i32, i32, i32
  }
  func.func @transform_2(%arg0: i32) -> (i32, i32) {
    %c0_i32 = arith.constant 0 : i32
    %c0_i32_0 = arith.constant 0 : i32
    %c0_i32_1 = arith.constant 0 : i32
    return %c0_i32, %c0_i32_0 : i32, i32
  }
  func.func @transform_3(%arg0: i32) -> (i32, i32) {
    %c0_i32 = arith.constant 0 : i32
    %c0_i32_0 = arith.constant 0 : i32
    %c0_i32_1 = arith.constant 0 : i32
    return %c0_i32, %c0_i32_0 : i32, i32
  }
  func.func @transform_4(%arg0: i32) -> (i32, i32) {
    %c0_i32 = arith.constant 0 : i32
    %c0_i32_0 = arith.constant 0 : i32
    return %arg0, %c0_i32 : i32, i32
  }
}

</mosaic_0001>

<llo_original>
// kernel: tpu_custom_call.1
$region0: #{tpu_custom_call.1}
  #allocation0 [shape = 'u32[]', space=smem, size = 0x4, offset = 0x4, fixed_abs, tag = 'smem constant byte address 0x4 - core index']
  #allocation1 [shape = 'u32[144,128]{1,0:T(1,128)}', space=vmem, size = 0x12000, scoped, tag = 'internal scratch']
  %s0 = inlined_call_operand.vmem [shape: s32[8,1], index: 0, kind: input, shape index: {}]
  %s1 = inlined_call_operand.hbm [shape: f32[8,8,32], index: 1, kind: input, shape index: {}]
  %s2 = inlined_call_operand.hbm [shape: f32[32,128], index: 2, kind: input, shape index: {}]
  %s3 = inlined_call_operand.vmem [shape: f32[1,128], index: 3, kind: input, shape index: {}]
  %s4 = inlined_call_operand.hbm [shape: f32[8,128], index: 4, kind: output, shape index: {}]
  %s5 = sld [smem:[#allocation0]]
  $region34: #{tpu_custom_call.1} parent=0
    _
  %s7 = ssub.s32 1, %s5
  %s8 = scalar_select 0, %s7, %s5
  $region1: #{tpu_custom_call.1} parent=0
    #allocation2 [shape = 'u8[32768]{0}', space=vmem, size = 0x8000, scoped, tag = 'input window, operand 1, single buffered']
    #allocation3 [shape = 's32[1]{0}', space=sflag, size = 0x4, scoped, tag = 'scoped memory for tpu_custom_call.1']
    #allocation4 [shape = 's32[1]{0}', space=sflag, size = 0x4, scoped, tag = 'scoped memory for tpu_custom_call.1']
    #allocation5 [shape = 'u8[16384]{0}', space=vmem, size = 0x4000, scoped, tag = 'input window, operand 2, single buffered']
    #allocation6 [shape = 's32[1]{0}', space=sflag, size = 0x4, scoped, tag = 'scoped memory for tpu_custom_call.1']
    #allocation7 [shape = 'u8[4096]{0}', space=vmem, size = 0x1000, scoped, tag = 'output window, operand 0, single buffered']
    %9 = vsyncpa [#allocation3], 0
    %10 = vsyncpa [#allocation6], 0
    %11 = vsyncpa [#allocation4], 0
    // Predicated region
    $region2: #{tpu_custom_call.1} parent=1 // pred_check
      _
    $region3: #{tpu_custom_call.1} parent=1 // pred_check_branch
      %13 = sbr.rel (0) target = $region5
    $region4: #{tpu_custom_call.1} parent=1 // pred_region
      _
    $region5: #{tpu_custom_call.1} parent=1 // pred_fallthru
      _
    // Predicated region
    $region6: #{tpu_custom_call.1} parent=1 // pred_check
      _
    $region7: #{tpu_custom_call.1} parent=1 // pred_check_branch
      %15 = sbr.rel (0) target = $region9
    $region8: #{tpu_custom_call.1} parent=1 // pred_region
      %s17 = ssub.s32 1024, 1024
      %18 = vsyncadd [#allocation3], %s17
      %s19 = sshll.u32 [#allocation2], 4
      %s20 = int_to_ptr.vmem [resolvable:$true] %s19
      %25 = dma.hbm_to_vmem [thread:$0]  %s1, 1024, %s20, [#allocation3], 128, 128, 8
    $region9: #{tpu_custom_call.1} parent=1 // pred_fallthru
      _
    // Predicated region
    $region10: #{tpu_custom_call.1} parent=1 // pred_check
      _
    $region11: #{tpu_custom_call.1} parent=1 // pred_check_branch
      %27 = sbr.rel (0) target = $region13
    $region12: #{tpu_custom_call.1} parent=1 // pred_region
      %s29 = ssub.s32 512, 512
      %30 = vsyncadd [#allocation6], %s29
      %s31 = sshll.u32 [#allocation5], 4
      %s32 = int_to_ptr.vmem [resolvable:$true] %s31
      %37 = dma.hbm_to_vmem [thread:$0]  %s2, 512, %s32, [#allocation6], 128, 128, 8
    $region13: #{tpu_custom_call.1} parent=1 // pred_fallthru
      _
    // Predicated region
    $region14: #{tpu_custom_call.1} parent=1 // pred_check
      _
    $region15: #{tpu_custom_call.1} parent=1 // pred_check_branch
      %39 = sbr.rel (0) target = $region17
    $region16: #{tpu_custom_call.1} parent=1 // pred_region
      _
    $region17: #{tpu_custom_call.1} parent=1 // pred_fallthru
      _
    // Predicated region
    $region18: #{tpu_custom_call.1} parent=1 // pred_check
      _
    $region19: #{tpu_custom_call.1} parent=1 // pred_check_branch
      %41 = sbr.rel (0) target = $region21
    $region20: #{tpu_custom_call.1} parent=1 // pred_region
      %42 = dma.done [#allocation3], 1024
    $region21: #{tpu_custom_call.1} parent=1 // pred_fallthru
      _
    // Predicated region
    $region22: #{tpu_custom_call.1} parent=1 // pred_check
      _
    $region23: #{tpu_custom_call.1} parent=1 // pred_check_branch
      %44 = sbr.rel (0) target = $region25
    $region24: #{tpu_custom_call.1} parent=1 // pred_region
      %45 = dma.done [#allocation6], 512
    $region25: #{tpu_custom_call.1} parent=1 // pred_fallthru
      _
    %v46 = vld [vmem:[#allocation2] sm:$0xff]
    %v47 = vld [vmem:[#allocation2 + $0x8] sm:$0xff]
    %v48 = vld [vmem:[#allocation2 + $0x10] sm:$0xff]
    %v49 = vld [vmem:[#allocation2 + $0x18] sm:$0xff]
    %v50 = vld [vmem:[#allocation2 + $0x20] sm:$0xff]
    %v51 = vld [vmem:[#allocation2 + $0x28] sm:$0xff]
    %v52 = vld [vmem:[#allocation2 + $0x30] sm:$0xff]
    %v53 = vld [vmem:[#allocation2 + $0x38] sm:$0xff]
    %v54 = vld [vmem:[%s0] sm:$0xff]
    %v55 = vsub.s32 %v54, 1
    %vm56 = vcmp.gt.s32.totalorder %v55, 0
    %v57 = vsel %vm56, %v55, 0
    %v58 = vlaneseq
    %v59 = vand.u32 %v58, 127
    %60 = vset.pattern.permute.xlu0 0
    %61 = vperm.xlu0 %60, %v57
    %v62 = vpop.permute.xlu0 %61
    %vm63 = vcmp.eq.s32.totalorder %v59, %v62
    %v64 = vsel %vm63, 1, 0
    %v65 = vcvt.s32.f32 %v64
    %v66 = vlaneseq
    %v67 = vshrl.u32 %v66, 7
    %v68 = vsub.s32 0, %v67
    %v69 = vrot.slane %v65, %v68
    %71 = vbcast.lane.b32.xlu0 %v69, 256
    %v72 = vpop.permute.xlu0 %71
    %v73 = vlaneseq
    %v74 = vshrl.u32 %v73, 7
    %v75 = vsub.s32 1, %v74
    %v76 = vrot.slane %v65, %v75
    %78 = vbcast.lane.b32.xlu0 %v76, 256
    %v79 = vpop.permute.xlu0 %78
    %v80 = vlaneseq
    %v81 = vshrl.u32 %v80, 7
    %v82 = vsub.s32 2, %v81
    %v83 = vrot.slane %v65, %v82
    %85 = vbcast.lane.b32.xlu0 %v83, 256
    %v86 = vpop.permute.xlu0 %85
    %v87 = vlaneseq
    %v88 = vshrl.u32 %v87, 7
    %v89 = vsub.s32 3, %v88
    %v90 = vrot.slane %v65, %v89
    %92 = vbcast.lane.b32.xlu0 %v90, 256
    %v93 = vpop.permute.xlu0 %92
    %v94 = vlaneseq
    %v95 = vshrl.u32 %v94, 7
    %v96 = vsub.s32 4, %v95
    %v97 = vrot.slane %v65, %v96
    %99 = vbcast.lane.b32.xlu0 %v97, 256
    %v100 = vpop.permute.xlu0 %99
    %v101 = vlaneseq
    %v102 = vshrl.u32 %v101, 7
    %v103 = vsub.s32 5, %v102
    %v104 = vrot.slane %v65, %v103
    %106 = vbcast.lane.b32.xlu0 %v104, 256
    %v107 = vpop.permute.xlu0 %106
    %v108 = vlaneseq
    %v109 = vshrl.u32 %v108, 7
    %v110 = vsub.s32 6, %v109
    %v111 = vrot.slane %v65, %v110
    %113 = vbcast.lane.b32.xlu0 %v111, 256
    %v114 = vpop.permute.xlu0 %113
    %v115 = vlaneseq
    %v116 = vshrl.u32 %v115, 7
    %v117 = vsub.s32 7, %v116
    %v118 = vrot.slane %v65, %v117
    %120 = vbcast.lane.b32.xlu0 %v118, 256
    %v121 = vpop.permute.xlu0 %120
    %v122 = vmul.f32 %v46, %v72
    %v123 = vmul.f32 %v47, %v79
    %v124 = vmul.f32 %v48, %v86
    %v125 = vmul.f32 %v49, %v93
    %v126 = vmul.f32 %v50, %v100
    %v127 = vmul.f32 %v51, %v107
    %v128 = vmul.f32 %v52, %v114
    %v129 = vmul.f32 %v53, %v121
    %vm130 = vcmask 261120
    %v131 = vsel %vm130, %v122, 0.0
    %v132 = vrot.slane %v131, 4
    %v133 = vadd.f32 %v131, %v132
    %v134 = vrot.slane %v133, 2
    %v135 = vadd.f32 %v133, %v134
    %v136 = vrot.slane %v135, 1
    %v137 = vadd.f32 %v135, %v136
    %v138 = vsel %vm130, %v123, 0.0
    %v139 = vrot.slane %v138, 4
    %v140 = vadd.f32 %v138, %v139
    %v141 = vrot.slane %v140, 2
    %v142 = vadd.f32 %v140, %v141
    %v143 = vrot.slane %v142, 1
    %v144 = vadd.f32 %v142, %v143
    %v145 = vsel %vm130, %v124, 0.0
    %v146 = vrot.slane %v145, 4
    %v147 = vadd.f32 %v145, %v146
    %v148 = vrot.slane %v147, 2
    %v149 = vadd.f32 %v147, %v148
    %v150 = vrot.slane %v149, 1
    %v151 = vadd.f32 %v149, %v150
    %v152 = vsel %vm130, %v125, 0.0
    %v153 = vrot.slane %v152, 4
    %v154 = vadd.f32 %v152, %v153
    %v155 = vrot.slane %v154, 2
    %v156 = vadd.f32 %v154, %v155
    %v157 = vrot.slane %v156, 1
    %v158 = vadd.f32 %v156, %v157
    %v159 = vsel %vm130, %v126, 0.0
    %v160 = vrot.slane %v159, 4
    %v161 = vadd.f32 %v159, %v160
    %v162 = vrot.slane %v161, 2
    %v163 = vadd.f32 %v161, %v162
    %v164 = vrot.slane %v163, 1
    %v165 = vadd.f32 %v163, %v164
    %v166 = vsel %vm130, %v127, 0.0
    %v167 = vrot.slane %v166, 4
    %v168 = vadd.f32 %v166, %v167
    %v169 = vrot.slane %v168, 2
    %v170 = vadd.f32 %v168, %v169
    %v171 = vrot.slane %v170, 1
    %v172 = vadd.f32 %v170, %v171
    %v173 = vsel %vm130, %v128, 0.0
    %v174 = vrot.slane %v173, 4
    %v175 = vadd.f32 %v173, %v174
    %v176 = vrot.slane %v175, 2
    %v177 = vadd.f32 %v175, %v176
    %v178 = vrot.slane %v177, 1
    %v179 = vadd.f32 %v177, %v178
    %v180 = vsel %vm130, %v129, 0.0
    %v181 = vrot.slane %v180, 4
    %v182 = vadd.f32 %v180, %v181
    %v183 = vrot.slane %v182, 2
    %v184 = vadd.f32 %v182, %v183
    %v185 = vrot.slane %v184, 1
    %v186 = vadd.f32 %v184, %v185
    %vm187 = vcmp.lt.s32.totalorder %v59, 16
    %vm196 = vcmask 1041409
    %v197 = vsel %vm196, %v144, %v137
    %vm198 = vcmask 1042434
    %v199 = vsel %vm198, %v151, %v197
    %vm200 = vcmask 1043459
    %v201 = vsel %vm200, %v158, %v199
    %vm202 = vcmask 1044484
    %v203 = vsel %vm202, %v165, %v201
    %vm204 = vcmask 1045509
    %v205 = vsel %vm204, %v172, %v203
    %vm206 = vcmask 1046534
    %v207 = vsel %vm206, %v179, %v205
    %vm208 = vcmask 1047559
    %v209 = vsel %vm208, %v186, %v207
    %v219 = vrot.slane %v47, 7
    %v220 = vsel %vm196, %v219, %v46
    %v221 = vrot.slane %v48, 6
    %v222 = vsel %vm198, %v221, %v220
    %v223 = vrot.slane %v49, 5
    %v224 = vsel %vm200, %v223, %v222
    %v225 = vrot.slane %v50, 4
    %v226 = vsel %vm202, %v225, %v224
    %v227 = vrot.slane %v51, 3
    %v228 = vsel %vm204, %v227, %v226
    %v229 = vrot.slane %v52, 2
    %v230 = vsel %vm206, %v229, %v228
    %v231 = vrot.slane %v53, 1
    %v232 = vsel %vm208, %v231, %v230
    %v234 = vsel %vm187, %v209, %v232
    %v235 = vld [vmem:[#allocation5] sm:$0xff]
    %v236 = vld [vmem:[#allocation5 + $0x8] sm:$0xff]
    %v237 = vld [vmem:[#allocation5 + $0x10] sm:$0xff]
    %v238 = vld [vmem:[#allocation5 + $0x18] sm:$0xff]
    %v239 = vld [vmem:[%s3] sm:$0x1]
    %v241 = vlaneseq
    %v242 = vshrl.u32 %v241, 7
    %v243 = vsub.s32 0, %v242
    %v244 = vrot.slane %v239, %v243
    %v247 = vsel %vm130, %v234, 0
    %249 = vmatprep.subr.mxu0 0.0
    %250 = vmatpush1.msra.mxu0 %v235
    %251 = vmatprep.subr.mxu0 0.0
    %252 = vmatpush1.msra.mxu0 %v236
    %253 = vmatprep.subr.mxu0 0.0
    %254 = vmatpush1.msra.mxu0 %v237
    %255 = vmatprep.subr.mxu0 0.0
    %256 = vmatpush1.msra.mxu0 %v238
    %257 = vmatprep.subr.mxu0 0.0
    %258 = vmatpush1.msra.mxu0 0.0
    %259 = vmatprep.subr.mxu0 0.0
    %260 = vmatpush1.msra.mxu0 0.0
    %261 = vmatprep.subr.mxu0 0.0
    %262 = vmatpush1.msra.mxu0 0.0
    %263 = vmatprep.subr.mxu0 0.0
    %264 = vmatpush1.msra.mxu0 0.0
    %265 = vmatprep.subr.mxu0 0.0
    %266 = vmatpush1.msra.mxu0 0.0
    %267 = vmatprep.subr.mxu0 0.0
    %268 = vmatpush1.msra.mxu0 0.0
    %269 = vmatprep.subr.mxu0 0.0
    %270 = vmatpush1.msra.mxu0 0.0
    %271 = vmatprep.subr.mxu0 0.0
    %272 = vmatpush1.msra.mxu0 0.0
    %273 = vmatprep.subr.mxu0 0.0
    %274 = vmatpush1.msra.mxu0 0.0
    %275 = vmatprep.subr.mxu0 0.0
    %276 = vmatpush1.msra.mxu0 0.0
    %277 = vmatprep.subr.mxu0 0.0
    %278 = vmatpush1.msra.mxu0 0.0
    %279 = vmatprep.subr.mxu0 0.0
    %280 = vmatpush1.msra.mxu0 0.0
    %281 = vmatprep.subr.mxu0 0.0
    %282 = vmatpush1.msra.mxu0 0.0
    %283 = vmatprep.subr.mxu0 0.0
    %284 = vmatpush1.msra.mxu0 0.0
    %285 = vmatprep.subr.mxu0 0.0
    %286 = vmatpush1.msra.mxu0 0.0
    %287 = vmatprep.subr.mxu0 0.0
    %288 = vmatpush1.msra.mxu0 0.0
    %289 = vmatprep.subr.mxu0 0.0
    %290 = vmatpush1.msra.mxu0 0.0
    %291 = vmatprep.subr.mxu0 0.0
    %292 = vmatpush1.msra.mxu0 0.0
    %293 = vmatprep.subr.mxu0 0.0
    %294 = vmatpush1.msra.mxu0 0.0
    %295 = vmatprep.subr.mxu0 0.0
    %296 = vmatpush1.msra.mxu0 0.0
    %297 = vmatprep.subr.mxu0 0.0
    %298 = vmatpush1.msra.mxu0 0.0
    %299 = vmatprep.subr.mxu0 0.0
    %300 = vmatpush1.msra.mxu0 0.0
    %301 = vmatprep.subr.mxu0 0.0
    %302 = vmatpush1.msra.mxu0 0.0
    %303 = vmatprep.subr.mxu0 0.0
    %304 = vmatpush1.msra.mxu0 0.0
    %305 = vmatprep.subr.mxu0 0.0
    %306 = vmatpush1.msra.mxu0 0.0
    %307 = vmatprep.subr.mxu0 0.0
    %308 = vmatpush1.msra.mxu0 0.0
    %309 = vmatprep.subr.mxu0 0.0
    %310 = vmatpush1.msra.mxu0 0.0
    %311 = vmatprep.subr.mxu0 0.0
    %312 = vmatpush1.msra.mxu0 0.0
    %313 = vmatprep.mubr.f32.mxu0 0.0
    %314 = vmatmul.mubr.f32.gmra.mrb[0].mxu0 %v247
    %v315 = vpop.f32.mrb[0].mxu0
    %v316 = vadd.f32 %v244, %v315
    %v317 = vpop.f32.mrb[0].mxu0
    %318 = vdwg.mxu0
    %319 = vst [vmem:[#allocation7] sm:$0xff] %v316
    // Predicated region
    $region26: #{tpu_custom_call.1} parent=1 // pred_check
      _
    $region27: #{tpu_custom_call.1} parent=1 // pred_check_branch
      %321 = sbr.rel (0) target = $region29
    $region28: #{tpu_custom_call.1} parent=1 // pred_region
      %s323 = ssub.s32 128, 128
      %324 = vsyncadd [#allocation4], %s323
      %s326 = sshll.u32 [#allocation7], 4
      %s327 = int_to_ptr.vmem [resolvable:$true] %s326
      %329 = dma.vmem_to_hbm [thread:$0]  %s327, 128, %s4, [#allocation4]
    $region29: #{tpu_custom_call.1} parent=1 // pred_fallthru
      _
    // Predicated region
    $region30: #{tpu_custom_call.1} parent=1 // pred_check
      _
    $region31: #{tpu_custom_call.1} parent=1 // pred_check_branch
      %331 = sbr.rel (0) target = $region33
    $region32: #{tpu_custom_call.1} parent=1 // pred_region
      %332 = dma.done [#allocation4], 128
    $region33: #{tpu_custom_call.1} parent=1 // pred_fallthru
      _
    %333 = vsyncpa [#allocation3], 1
    %334 = vsyncpa [#allocation6], 1
    %335 = vsyncpa [#allocation4], 1

</llo_original>
